<compile_context>
chip_gen: v5e
topology: v5e:2x2
jax: 0.10.0
libtpu: 0.0.40
codegen_flags: <defaults>
</compile_context>

<pallas_src>
import functools

import numpy as np
import jax
import jax.numpy as jnp
from jax.experimental import pallas as pl
from jax.experimental.pallas import tpu as pltpu


def _sine_pe_kernel(x_ref, o_ref, *, embed_dim, pack, max_wavelength):
    """One (BB, TS, L) block, L = pack * embed_dim.

    The PE tile (1, TS, L) depends only on the sequence-tile index, so it is
    computed once per block and broadcast across the BB batch rows.
    """
    _, TS, L = x_ref.shape
    D = float(embed_dim)

    # Packed-lane index l in [0, L): original position offset = l // D and
    # embedding-dim index d = l % D.  When pack > 1, D divides 128 so 1/D is
    # exact in f32 and the floor/compare math below is exact integer math.
    lane = jax.lax.broadcasted_iota(jnp.int32, (1, 1, L), 2).astype(jnp.float32)
    if pack > 1:
        pos_off = jnp.floor((lane + 0.5) * jnp.float32(1.0 / D))
        d = lane - jnp.float32(D) * pos_off
    else:
        d = lane

    # Even/odd interleave: pair = d - (d % 2) selects the shared frequency;
    # even lanes take sin, odd lanes take cos (computed directly).
    pair = 2.0 * jnp.floor(0.5 * d + 0.25)
    is_even = d == pair
    inv_freq = jnp.exp(pair * jnp.float32(-np.log(max_wavelength) / D))  # (1,1,L)

    # Global positions for this sequence tile.
    row = jax.lax.broadcasted_iota(jnp.int32, (1, TS, 1), 1).astype(jnp.float32)
    s_base = (pl.program_id(0) * (TS * pack)).astype(jnp.float32)
    if pack > 1:
        pos = s_base + row * jnp.float32(pack) + pos_off   # (1, TS, L)
    else:
        pos = s_base + row                                  # (1, TS, 1)

    arg = pos * inv_freq                                    # (1, TS, L)
    pe = jnp.where(is_even, jnp.sin(arg), jnp.cos(arg))     # f32

    x = x_ref[...]
    if x.dtype == jnp.float32:
        o_ref[...] = x + pe
    else:
        # Sub-32-bit x (e.g. bf16): add in the native dtype; the result is
        # cast to x.dtype anyway so accuracy is unchanged and we avoid a
        # per-element f32 round trip.
        o_ref[...] = x + pe.astype(x.dtype)


def _round_down8(v):
    return max(8, v - (v % 8))


def _choose_blocks(B, Sp, L, itemsize, budget):
    """Pick (BB, TS): x block <= budget bytes AND f32 PE temps <= budget bytes.

    TS is a multiple of 8 or equals the full (packed) sequence length.
    """
    max_rows_pe = max(1, budget // (4 * L))            # cap from f32 PE temps
    bb = B
    ts = min(max(1, budget // (bb * L * itemsize)), max_rows_pe)
    if ts < min(8, Sp) and bb > 1:
        # Shrink the batch block so each block still holds >= 8 sequence rows.
        bb = min(B, max(1, budget // (min(8, Sp) * L * itemsize)))
        ts = min(max(1, budget // (bb * L * itemsize)), max_rows_pe)
    if ts >= Sp:
        ts = Sp
    elif ts >= 8:
        ts = _round_down8(ts)
    else:
        ts = min(8, Sp)
    return bb, ts


def sine_position_encoding(x, max_wavelength=10000, *,
                           block_budget_bytes=2 * 1024 * 1024):
    """x: (B, S, D) -> x + sinusoidal positional encoding (computed in-kernel)."""
    B, S, D = x.shape
    if D % 2 != 0:
        # The reference PE is ill-defined for odd embed_dim (shape mismatch).
        raise ValueError("embed_dim must be even")
    itemsize = np.dtype(x.dtype).itemsize

    # Lane-dense packing for small embed dims: (B, S, D) -> (B, S/k, k*D).
    pack = 1
    if D < 128 and 128 % D == 0 and S % (128 // D) == 0:
        pack = 128 // D
    Sp, L = S // pack, D * pack
    xr = x.reshape(B, Sp, L) if pack > 1 else x

    BB, TS = _choose_blocks(B, Sp, L, itemsize, block_budget_bytes)
    n_seq = pl.cdiv(Sp, TS)
    n_bat = pl.cdiv(B, BB)

    # Prefer an even number of parallel blocks so v7x's two TensorCores split
    # the grid evenly (every block is independent in this elementwise kernel).
    if n_seq > 1 and (n_seq * n_bat) % 2 == 1:
        ts2 = ((pl.cdiv(Sp, n_seq + 1) + 7) // 8) * 8
        if 8 <= ts2 < Sp and (pl.cdiv(Sp, ts2) * n_bat) % 2 == 0:
            TS, n_seq = ts2, pl.cdiv(Sp, ts2)

    # Explicit scoped-VMEM budget: 2x double-buffered input + output blocks
    # plus f32 PE temporaries, with headroom.  Safe on v5e/v6e/v7x.
    block_bytes = BB * TS * L * itemsize
    pe_bytes = TS * L * 4
    needed = 4 * block_bytes + 4 * pe_bytes
    vmem_limit = int(min(max(needed + (8 << 20), 32 << 20), 60 << 20))

    kernel = functools.partial(_sine_pe_kernel, embed_dim=D, pack=pack,
                               max_wavelength=max_wavelength)

    out = pl.pallas_call(
        kernel,
        out_shape=jax.ShapeDtypeStruct((B, Sp, L), x.dtype),
        grid=(n_seq, n_bat),
        in_specs=[pl.BlockSpec((BB, TS, L), lambda si, bi: (bi, si, 0))],
        out_specs=pl.BlockSpec((BB, TS, L), lambda si, bi: (bi, si, 0)),
        compiler_params=pltpu.CompilerParams(
            dimension_semantics=("parallel", "parallel"),
            vmem_limit_bytes=vmem_limit),
        cost_estimate=pl.CostEstimate(
            flops=B * S * D,                         # one add per element
            transcendentals=2 * S * D * n_bat,       # sin+cos per PE element
            bytes_accessed=2 * B * S * D * itemsize),
    )(xr)
    return out.reshape(B, S, D) if pack > 1 else out


def _reference(x, max_wavelength=10000):
    # Pure-JAX mirror of the PyTorch forward.
    _, S, D = x.shape
    position = jnp.arange(S, dtype=jnp.float32)[:, None]
    div_term = jnp.exp(jnp.arange(0, D, 2, dtype=jnp.float32) *
                       (-np.log(max_wavelength) / D))
    pe = jnp.zeros((S, D), jnp.float32)
    pe = pe.at[:, 0::2].set(jnp.sin(position * div_term))
    pe = pe.at[:, 1::2].set(jnp.cos(position * div_term))
    return x + pe[None]


if __name__ == "__main__":
    key = jax.random.PRNGKey(0)
    k1, k2, k3 = jax.random.split(key, 3)

    # Module-spec shape: batch=2, seq=8, hidden=32 (lane-dense packed path, k=4).
    x1 = jax.random.normal(k1, (2, 8, 32), dtype=jnp.float32)
    o1 = jax.block_until_ready(sine_position_encoding(x1))
    np.testing.assert_allclose(np.asarray(o1), np.asarray(_reference(x1)),
                               rtol=1e-5, atol=1e-5)

    # Unpacked path (D does not divide 128); single full block.
    x2 = jax.random.normal(k2, (2, 24, 40), dtype=jnp.float32)
    o2 = jax.block_until_ready(sine_position_encoding(x2))
    np.testing.assert_allclose(np.asarray(o2), np.asarray(_reference(x2)),
                               rtol=1e-5, atol=1e-5)

    # Multi-tile grid with ragged last sequence/batch blocks (tiny budget
    # forces TS=8, BB=2 so the cdiv/masked-partial-block path is exercised).
    x3 = jax.random.normal(k3, (3, 80, 32), dtype=jnp.float32)
    o3 = jax.block_until_ready(sine_position_encoding(x3, block_budget_bytes=8192))
    np.testing.assert_allclose(np.asarray(o3), np.asarray(_reference(x3)),
                               rtol=1e-5, atol=1e-5)

    print("KERNEL_OK")
</pallas_src>

<mosaic_0001>
module attributes {stable_mosaic.version = 11 : i64} {
  func.func @_sine_pe_kernel(%arg0: i32, %arg1: i32, %arg2: memref<2x2x128xf32, #tpu.memory_space<vmem>>, %arg3: memref<2x2x128xf32, #tpu.memory_space<vmem>>) attributes {dimension_semantics = [#tpu.dimension_semantics<parallel>, #tpu.dimension_semantics<parallel>], iteration_bounds = array<i64: 1, 1>, scalar_prefetch = 0 : i64, scratch_operands = 0 : i64, tpu.core_type = #tpu.core_type<tc>, window_params = [{transform_indices = @transform_0, window_bounds = array<i64: 2, 2, 128>}, {transform_indices = @transform_1, window_bounds = array<i64: 2, 2, 128>}]} {
    %0 = tpu.iota {dimensions = array<i32: 2>} : vector<1x1x128xi32>
    %1 = arith.sitofp %0 : vector<1x1x128xi32> to vector<1x1x128xf32>
    %cst = arith.constant 5.000000e-01 : f32
    %2 = vector.broadcast %cst : f32 to vector<1x1x128xf32>
    %3 = arith.addf %1, %2 : vector<1x1x128xf32>
    %cst_0 = arith.constant 3.125000e-02 : f32
    %4 = vector.broadcast %cst_0 : f32 to vector<1x1x128xf32>
    %5 = arith.mulf %3, %4 : vector<1x1x128xf32>
    %6 = math.floor %5 : vector<1x1x128xf32>
    %cst_1 = arith.constant 3.200000e+01 : f32
    %7 = vector.broadcast %cst_1 : f32 to vector<1x1x128xf32>
    %8 = arith.mulf %7, %6 : vector<1x1x128xf32>
    %9 = arith.subf %1, %8 : vector<1x1x128xf32>
    %cst_2 = arith.constant 5.000000e-01 : f32
    %10 = vector.broadcast %cst_2 : f32 to vector<1x1x128xf32>
    %11 = arith.mulf %10, %9 : vector<1x1x128xf32>
    %cst_3 = arith.constant 2.500000e-01 : f32
    %12 = vector.broadcast %cst_3 : f32 to vector<1x1x128xf32>
    %13 = arith.addf %11, %12 : vector<1x1x128xf32>
    %14 = math.floor %13 : vector<1x1x128xf32>
    %cst_4 = arith.constant 2.000000e+00 : f32
    %15 = vector.broadcast %cst_4 : f32 to vector<1x1x128xf32>
    %16 = arith.mulf %15, %14 : vector<1x1x128xf32>
    %17 = arith.cmpf oeq, %9, %16 : vector<1x1x128xf32>
    %cst_5 = arith.constant -0.287823141 : f32
    %18 = vector.broadcast %cst_5 : f32 to vector<1x1x128xf32>
    %19 = arith.mulf %16, %18 : vector<1x1x128xf32>
    %20 = math.exp %19 : vector<1x1x128xf32>
    %21 = tpu.iota {dimensions = array<i32: 1>} : vector<1x2x1xi32>
    %22 = arith.sitofp %21 : vector<1x2x1xi32> to vector<1x2x1xf32>
    %c8_i32 = arith.constant 8 : i32
    %23 = arith.muli %arg0, %c8_i32 : i32
    %24 = arith.sitofp %23 : i32 to f32
    %cst_6 = arith.constant 4.000000e+00 : f32
    %25 = vector.broadcast %cst_6 : f32 to vector<1x2x1xf32>
    %26 = arith.mulf %22, %25 : vector<1x2x1xf32>
    %27 = vector.broadcast %24 : f32 to vector<1x2x1xf32>
    %28 = arith.addf %27, %26 : vector<1x2x1xf32>
    %29 = vector.broadcast %28 : vector<1x2x1xf32> to vector<1x2x128xf32>
    %30 = vector.broadcast %6 : vector<1x1x128xf32> to vector<1x2x128xf32>
    %31 = arith.addf %29, %30 : vector<1x2x128xf32>
    %32 = vector.broadcast %20 : vector<1x1x128xf32> to vector<1x2x128xf32>
    %33 = arith.mulf %31, %32 : vector<1x2x128xf32>
    %34 = math.sin %33 : vector<1x2x128xf32>
    %35 = math.cos %33 : vector<1x2x128xf32>
    %36 = vector.shape_cast %17 : vector<1x1x128xi1> to vector<1x1x128xi1>
    %37 = vector.broadcast %36 : vector<1x1x128xi1> to vector<1x2x128xi1>
    %38 = arith.select %37, %34, %35 : vector<1x2x128xi1>, vector<1x2x128xf32>
    %c0 = arith.constant 0 : index
    %c0_7 = arith.constant 0 : index
    %c0_8 = arith.constant 0 : index
    %39 = vector.load %arg2[%c0, %c0_7, %c0_8] : memref<2x2x128xf32, #tpu.memory_space<vmem>>, vector<2x2x128xf32>
    %40 = vector.broadcast %38 : vector<1x2x128xf32> to vector<2x2x128xf32>
    %41 = arith.addf %39, %40 : vector<2x2x128xf32>
    %c0_9 = arith.constant 0 : index
    %c0_10 = arith.constant 0 : index
    %c0_11 = arith.constant 0 : index
    %42 = vector.load %arg3[%c0_9, %c0_10, %c0_11] : memref<2x2x128xf32, #tpu.memory_space<vmem>>, vector<2x2x128xf32>
    tpu.vector_store %arg3[%c0_9, %c0_10, %c0_11], %41 {strides = array<i32>} : memref<2x2x128xf32, #tpu.memory_space<vmem>>, vector<2x2x128xf32>,
    return
  }
  func.func @transform_0(%arg0: i32, %arg1: i32) -> (i32, i32, i32) {
    %c0_i32 = arith.constant 0 : i32
    %c0_i32_0 = arith.constant 0 : i32
    return %arg1, %arg0, %c0_i32 : i32, i32, i32
  }
  func.func @transform_1(%arg0: i32, %arg1: i32) -> (i32, i32, i32) {
    %c0_i32 = arith.constant 0 : i32
    %c0_i32_0 = arith.constant 0 : i32
    return %arg1, %arg0, %c0_i32 : i32, i32, i32
  }
}

</mosaic_0001>

<llo_original>
// kernel: tpu_custom_call.1
$region0: #{tpu_custom_call.1}
  #allocation0 [shape = 'u32[]', space=smem, size = 0x4, offset = 0x4, fixed_abs, tag = 'smem constant byte address 0x4 - core index']
  #allocation1 [shape = 'u32[72,128]{1,0:T(1,128)}', space=vmem, size = 0x9000, scoped, tag = 'internal scratch']
  %s0 = inlined_call_operand.hbm [shape: f32[2,2,128], index: 0, kind: input, shape index: {}]
  %s1 = inlined_call_operand.hbm [shape: f32[2,2,128], index: 1, kind: output, shape index: {}]
  %s2 = sld [smem:[#allocation0]]
  $region18: #{tpu_custom_call.1} parent=0
    _
  %s4 = ssub.s32 1, %s2
  %s5 = scalar_select 0, %s4, %s2
  $region1: #{tpu_custom_call.1} parent=0
    #allocation2 [shape = 'u8[2048]{0}', space=vmem, size = 0x800, scoped, tag = 'input window, operand 0, single buffered']
    #allocation3 [shape = 's32[1]{0}', space=sflag, size = 0x4, scoped, tag = 'scoped memory for tpu_custom_call.1']
    #allocation4 [shape = 's32[1]{0}', space=sflag, size = 0x4, scoped, tag = 'scoped memory for tpu_custom_call.1']
    #allocation5 [shape = 'u8[2048]{0}', space=vmem, size = 0x800, scoped, tag = 'output window, operand 0, single buffered']
    %6 = vsyncpa [#allocation3], 0
    %7 = vsyncpa [#allocation4], 0
    // Predicated region
    $region2: #{tpu_custom_call.1} parent=1 // pred_check
      _
    $region3: #{tpu_custom_call.1} parent=1 // pred_check_branch
      %9 = sbr.rel (0) target = $region5
    $region4: #{tpu_custom_call.1} parent=1 // pred_region
      %11 = vsyncadd [#allocation3], 0
      %s12 = sshll.u32 %s0, 4
      %s13 = int_to_ptr.hbm [resolvable:$true] %s12
      %s14 = sshll.u32 [#allocation2], 4
      %s15 = int_to_ptr.vmem [resolvable:$true] %s14
      %20 = dma.hbm_to_vmem [thread:$0]  %s13, 64, %s15, [#allocation3], 32, 32, 2
    $region5: #{tpu_custom_call.1} parent=1 // pred_fallthru
      _
    // Predicated region
    $region6: #{tpu_custom_call.1} parent=1 // pred_check
      _
    $region7: #{tpu_custom_call.1} parent=1 // pred_check_branch
      %22 = sbr.rel (0) target = $region9
    $region8: #{tpu_custom_call.1} parent=1 // pred_region
      %24 = dma.done [#allocation3], 64
    $region9: #{tpu_custom_call.1} parent=1 // pred_fallthru
      _
    %v25 = vlaneseq
    %v26 = vand.u32 %v25, 127
    %v27 = vcvt.s32.f32 %v26
    %v28 = vadd.f32 %v27, 0.5
    %v29 = vmul.f32 %v28, 0.03125
    %v30 = vfloor.f32 %v29
    %v31 = vmul.f32 %v30, 32.0
    %v32 = vsub.f32 %v27, %v31
    %v33 = vmul.f32 %v32, 0.5
    %v34 = vadd.f32 %v33, 0.25
    %v35 = vfloor.f32 %v34
    %v36 = vmul.f32 %v35, 2.0
    %vm37 = vcmp.eq.f32.partialorder %v32, %v36
    %v38 = vmul.f32 %v36, -0.28782314
    %v39 = vmul.f32 %v38, 1.442695
    %v40 = vpow.pop %v39
    %v41 = vlaneseq
    %v42 = vshrl.u32 %v41, 7
    %v43 = vcvt.s32.f32 %v42
    %s44 = smul.u32 0, 8
    %s45 = scvt.s32.f32 %s44
    %v46 = vmul.f32 %v43, 4.0
    %v47 = vstv %s45
    %v48 = vadd.f32 %v47, %v46
    %v49 = vadd.f32 %v48, %v30
    %v50 = vmul.f32 %v49, %v40
    %v51 = vand.u32 2147483647, %v50
    %vm52 = vcmp.le.f32.partialorder %v51, 0.7853982
    %vm53 = vcmp.lt.s32.totalorder %v50, 0
    %v54 = vand.u32 %v50, 2139095040
    %v55 = vshrl.u32 %v54, 23
    %v56 = vsub.s32 %v55, 127
    %v57 = vand.u32 2147483647, %v50
    %v58 = vand.u32 %v57, 8388607
    %v59 = vor.u32 %v58, 8388608
    %v60 = vsub.s32 0, %v59
    %v61 = vadd.s32 %v56, 1
    %vm62 = vcmp.gt.s32.totalorder %v61, 0
    %v63 = vsel %vm62, %v61, 0
    %v64 = vshrl.u32 %v63, 5
    %v65 = vand.u32 %v63, 31
    %v66 = vsub.s32 32, %v65
    %v67 = vshrl.u32 683565275, %v66
    %v68 = vshll.u32 683565275, %v65
    %v69 = vshrl.u32 2475754826, %v66
    %v70 = vor.u32 %v68, %v69
    %v71 = vshll.u32 2475754826, %v65
    %v72 = vshrl.u32 2131351028, %v66
    %v73 = vor.u32 %v71, %v72
    %v74 = vshll.u32 2131351028, %v65
    %v75 = vshrl.u32 2102212464, %v66
    %v76 = vor.u32 %v74, %v75
    %v77 = vshll.u32 2102212464, %v65
    %v78 = vshrl.u32 920167782, %v66
    %v79 = vor.u32 %v77, %v78
    %v80 = vshll.u32 920167782, %v65
    %v81 = vshrl.u32 1326507024, %v66
    %v82 = vor.u32 %v80, %v81
    %vm83 = vcmp.lt.s32.totalorder %v64, 1
    %vm84 = vcmp.lt.s32.totalorder %v64, 2
    %vm85 = vcmp.lt.s32.totalorder %v64, 3
    %vm86 = vcmp.lt.s32.totalorder %v64, 4
    %v87 = vsel %vm83, %v67, %v70
    %v88 = vsel %vm86, %v76, 2102212464
    %v89 = vsel %vm85, %v73, %v88
    %v90 = vsel %vm84, %v87, %v89
    %v91 = vsel %vm83, %v70, %v73
    %v92 = vsel %vm86, %v79, 920167782
    %v93 = vsel %vm85, %v76, %v92
    %v94 = vsel %vm84, %v91, %v93
    %v95 = vsel %vm83, %v73, %v76
    %v96 = vsel %vm86, %v82, 1326507024
    %v97 = vsel %vm85, %v79, %v96
    %v98 = vsel %vm84, %v95, %v97
    %v99 = vshll.u32 %v59, 8
    %v100 = vand.u32 %v99, 65535
    %v101 = vshrl.u32 %v99, 16
    %v102 = vand.u32 %v98, 65535
    %v103 = vshrl.u32 %v98, 16
    %v104 = vmul.u32 %v100, %v102
    %v105 = vmul.u32 %v100, %v103
    %v106 = vmul.u32 %v101, %v102
    %v107 = vmul.u32 %v101, %v103
    %v108 = vshll.u32 %v105, 16
    %v109 = vshrl.u32 %v105, 16
    %v110 = vshll.u32 %v106, 16
    %v111 = vshrl.u32 %v106, 16
    %vm112 = vc.u32 %v104, %v108
    %v113 = vsel %vm112, 1, 0
    %v114 = vadd.s32 %v104, %v108
    %v115 = vadd.s32 %v107, %v113
    %vm116 = vc.u32 %v114, %v110
    %v117 = vsel %vm116, 1, 0
    %v118 = vadd.s32 %v114, %v110
    %v119 = vadd.s32 %v115, %v117
    %v120 = vadd.s32 %v119, %v109
    %v121 = vadd.s32 %v120, %v111
    %v122 = vand.u32 %v99, 65535
    %v123 = vshrl.u32 %v99, 16
    %v124 = vand.u32 %v94, 65535
    %v125 = vshrl.u32 %v94, 16
    %v126 = vmul.u32 %v122, %v124
    %v127 = vmul.u32 %v122, %v125
    %v128 = vmul.u32 %v123, %v124
    %v129 = vmul.u32 %v123, %v125
    %v130 = vshll.u32 %v127, 16
    %v131 = vshrl.u32 %v127, 16
    %v132 = vshll.u32 %v128, 16
    %v133 = vshrl.u32 %v128, 16
    %vm134 = vc.u32 %v126, %v130
    %v135 = vsel %vm134, 1, 0
    %v136 = vadd.s32 %v126, %v130
    %v137 = vadd.s32 %v129, %v135
    %vm138 = vc.u32 %v136, %v132
    %v139 = vsel %vm138, 1, 0
    %v140 = vadd.s32 %v136, %v132
    %v141 = vadd.s32 %v137, %v139
    %v142 = vadd.s32 %v141, %v131
    %v143 = vadd.s32 %v142, %v133
    %v144 = vmul.u32 %v99, %v90
    %v145 = vadd.s32 %v121, %v140
    %vm146 = vc.u32 %v121, %v140
    %v147 = vadd.s32 %v143, 1
    %v148 = vsel %vm146, %v147, %v143
    %v149 = vadd.s32 %v144, %v148
    %v150 = vadd.s32 %v149, 536870912
    %v151 = vshrl.u32 %v150, 30
    %v152 = vshll.u32 %v151, 30
    %v153 = vsub.s32 %v149, %v152
    %vm154 = vcmp.lt.s32.totalorder %v153, 0
    %v155 = vsub.s32 0, %v153
    %v156 = vsel %vm154, %v155, %v153
    %v157 = vclz %v156
    %v158 = vsub.s32 %v157, 2
    %vm159 = vcmp.gt.s32.totalorder 0, %v158
    %v160 = vsel %vm159, 0, %v158
    %v161 = vsub.s32 32, %v160
    %v162 = vshll.u32 %v153, %v160
    %v163 = vshrl.u32 %v145, %v161
    %v164 = vor.u32 %v162, %v163
    %v165 = vsub.s32 4294967266, %v160
    %v166 = vadd.s32 %v165, 127
    %v167 = vshll.u32 %v166, 23
    %v168 = vor.u32 4788187, %v167
    %v169 = vand.u32 2147483647, %v168
    %v171 = vcvt.s32.f32 %v164
    %v172 = vmul.f32 %v171, %v169
    %v173 = vxor.u32 %v172, 2147483648
    %v174 = vsel %vm53, %v173, %v172
    %v175 = vsub.s32 4, %v151
    %v176 = vsel %vm53, %v175, %v151
    %v177 = vsel %vm52, %v50, %v174
    %v178 = vsel %vm52, 0, %v176
    %v179 = vmul.f32 %v177, %v177
    %v180 = vmul.f32 %v179, -0.001358992
    %v181 = vadd.f32 %v180, 0.041655596
    %v182 = vmul.f32 %v179, %v181
    %v183 = vadd.f32 %v182, -0.4999988
    %v184 = vmul.f32 %v179, %v183
    %v185 = vadd.f32 1.0, %v184
    %v186 = vmul.f32 %v177, %v177
    %v187 = vmul.f32 %v186, -0.00019511016
    %v188 = vadd.f32 %v187, 0.008332121
    %v189 = vmul.f32 %v186, %v188
    %v190 = vadd.f32 %v189, -0.16666654
    %v191 = vmul.f32 %v186, %v190
    %v192 = vadd.f32 %v191, 1.0
    %v193 = vmul.f32 %v192, %v177
    %vm194 = vweird.f32 %v50
    %v195 = vadd.s32 %v178, 3
    %v196 = vand.u32 %v195, 3
    %vm197 = vcmp.lt.s32.totalorder %v196, 2
    %vm198 = vcmp.eq.s32.totalorder %v196, 0
    %v199 = vxor.u32 %v193, 2147483648
    %v200 = vsel %vm198, %v185, %v199
    %vm201 = vcmp.eq.s32.totalorder %v196, 2
    %v202 = vxor.u32 %v185, 2147483648
    %v203 = vsel %vm201, %v202, %v193
    %v204 = vsel %vm197, %v200, %v203
    %v205 = vsel %vm194, nan, %v204
    %v206 = vand.u32 2147483647, %v50
    %vm207 = vcmp.le.f32.partialorder %v206, 0.7853982
    %vm208 = vcmp.lt.s32.totalorder %v50, 0
    %v209 = vand.u32 %v50, 2139095040
    %v210 = vshrl.u32 %v209, 23
    %v211 = vsub.s32 %v210, 127
    %v212 = vand.u32 2147483647, %v50
    %v213 = vand.u32 %v212, 8388607
    %v214 = vor.u32 %v213, 8388608
    %v215 = vsub.s32 0, %v214
    %v216 = vadd.s32 %v211, 1
    %vm217 = vcmp.gt.s32.totalorder %v216, 0
    %v218 = vsel %vm217, %v216, 0
    %v219 = vshrl.u32 %v218, 5
    %v220 = vand.u32 %v218, 31
    %v221 = vsub.s32 32, %v220
    %v222 = vshrl.u32 683565275, %v221
    %v223 = vshll.u32 683565275, %v220
    %v224 = vshrl.u32 2475754826, %v221
    %v225 = vor.u32 %v223, %v224
    %v226 = vshll.u32 2475754826, %v220
    %v227 = vshrl.u32 2131351028, %v221
    %v228 = vor.u32 %v226, %v227
    %v229 = vshll.u32 2131351028, %v220
    %v230 = vshrl.u32 2102212464, %v221
    %v231 = vor.u32 %v229, %v230
    %v232 = vshll.u32 2102212464, %v220
    %v233 = vshrl.u32 920167782, %v221
    %v234 = vor.u32 %v232, %v233
    %v235 = vshll.u32 920167782, %v220
    %v236 = vshrl.u32 1326507024, %v221
    %v237 = vor.u32 %v235, %v236
    %vm238 = vcmp.lt.s32.totalorder %v219, 1
    %vm239 = vcmp.lt.s32.totalorder %v219, 2
    %vm240 = vcmp.lt.s32.totalorder %v219, 3
    %vm241 = vcmp.lt.s32.totalorder %v219, 4
    %v242 = vsel %vm238, %v222, %v225
    %v243 = vsel %vm241, %v231, 2102212464
    %v244 = vsel %vm240, %v228, %v243
    %v245 = vsel %vm239, %v242, %v244
    %v246 = vsel %vm238, %v225, %v228
    %v247 = vsel %vm241, %v234, 920167782
    %v248 = vsel %vm240, %v231, %v247
    %v249 = vsel %vm239, %v246, %v248
    %v250 = vsel %vm238, %v228, %v231
    %v251 = vsel %vm241, %v237, 1326507024
    %v252 = vsel %vm240, %v234, %v251
    %v253 = vsel %vm239, %v250, %v252
    %v254 = vshll.u32 %v214, 8
    %v255 = vand.u32 %v254, 65535
    %v256 = vshrl.u32 %v254, 16
    %v257 = vand.u32 %v253, 65535
    %v258 = vshrl.u32 %v253, 16
    %v259 = vmul.u32 %v255, %v257
    %v260 = vmul.u32 %v255, %v258
    %v261 = vmul.u32 %v256, %v257
    %v262 = vmul.u32 %v256, %v258
    %v263 = vshll.u32 %v260, 16
    %v264 = vshrl.u32 %v260, 16
    %v265 = vshll.u32 %v261, 16
    %v266 = vshrl.u32 %v261, 16
    %vm267 = vc.u32 %v259, %v263
    %v268 = vsel %vm267, 1, 0
    %v269 = vadd.s32 %v259, %v263
    %v270 = vadd.s32 %v262, %v268
    %vm271 = vc.u32 %v269, %v265
    %v272 = vsel %vm271, 1, 0
    %v273 = vadd.s32 %v269, %v265
    %v274 = vadd.s32 %v270, %v272
    %v275 = vadd.s32 %v274, %v264
    %v276 = vadd.s32 %v275, %v266
    %v277 = vand.u32 %v254, 65535
    %v278 = vshrl.u32 %v254, 16
    %v279 = vand.u32 %v249, 65535
    %v280 = vshrl.u32 %v249, 16
    %v281 = vmul.u32 %v277, %v279
    %v282 = vmul.u32 %v277, %v280
    %v283 = vmul.u32 %v278, %v279
    %v284 = vmul.u32 %v278, %v280
    %v285 = vshll.u32 %v282, 16
    %v286 = vshrl.u32 %v282, 16
    %v287 = vshll.u32 %v283, 16
    %v288 = vshrl.u32 %v283, 16
    %vm289 = vc.u32 %v281, %v285
    %v290 = vsel %vm289, 1, 0
    %v291 = vadd.s32 %v281, %v285
    %v292 = vadd.s32 %v284, %v290
    %vm293 = vc.u32 %v291, %v287
    %v294 = vsel %vm293, 1, 0
    %v295 = vadd.s32 %v291, %v287
    %v296 = vadd.s32 %v292, %v294
    %v297 = vadd.s32 %v296, %v286
    %v298 = vadd.s32 %v297, %v288
    %v299 = vmul.u32 %v254, %v245
    %v300 = vadd.s32 %v276, %v295
    %vm301 = vc.u32 %v276, %v295
    %v302 = vadd.s32 %v298, 1
    %v303 = vsel %vm301, %v302, %v298
    %v304 = vadd.s32 %v299, %v303
    %v305 = vadd.s32 %v304, 536870912
    %v306 = vshrl.u32 %v305, 30
    %v307 = vshll.u32 %v306, 30
    %v308 = vsub.s32 %v304, %v307
    %vm309 = vcmp.lt.s32.totalorder %v308, 0
    %v310 = vsub.s32 0, %v308
    %v311 = vsel %vm309, %v310, %v308
    %v312 = vclz %v311
    %v313 = vsub.s32 %v312, 2
    %vm314 = vcmp.gt.s32.totalorder 0, %v313
    %v315 = vsel %vm314, 0, %v313
    %v316 = vsub.s32 32, %v315
    %v317 = vshll.u32 %v308, %v315
    %v318 = vshrl.u32 %v300, %v316
    %v319 = vor.u32 %v317, %v318
    %v320 = vsub.s32 4294967266, %v315
    %v321 = vadd.s32 %v320, 127
    %v322 = vshll.u32 %v321, 23
    %v323 = vor.u32 4788187, %v322
    %v324 = vand.u32 2147483647, %v323
    %v326 = vcvt.s32.f32 %v319
    %v327 = vmul.f32 %v326, %v324
    %v328 = vxor.u32 %v327, 2147483648
    %v329 = vsel %vm208, %v328, %v327
    %v330 = vsub.s32 4, %v306
    %v331 = vsel %vm208, %v330, %v306
    %v332 = vsel %vm207, %v50, %v329
    %v333 = vsel %vm207, 0, %v331
    %v334 = vmul.f32 %v332, %v332
    %v335 = vmul.f32 %v334, -0.001358992
    %v336 = vadd.f32 %v335, 0.041655596
    %v337 = vmul.f32 %v334, %v336
    %v338 = vadd.f32 %v337, -0.4999988
    %v339 = vmul.f32 %v334, %v338
    %v340 = vadd.f32 1.0, %v339
    %v341 = vmul.f32 %v332, %v332
    %v342 = vmul.f32 %v341, -0.00019511016
    %v343 = vadd.f32 %v342, 0.008332121
    %v344 = vmul.f32 %v341, %v343
    %v345 = vadd.f32 %v344, -0.16666654
    %v346 = vmul.f32 %v341, %v345
    %v347 = vadd.f32 %v346, 1.0
    %v348 = vmul.f32 %v347, %v332
    %vm349 = vweird.f32 %v50
    %v350 = vand.u32 %v333, 3
    %vm351 = vcmp.lt.s32.totalorder %v350, 2
    %vm352 = vcmp.eq.s32.totalorder %v350, 0
    %v353 = vxor.u32 %v348, 2147483648
    %v354 = vsel %vm352, %v340, %v353
    %vm355 = vcmp.eq.s32.totalorder %v350, 2
    %v356 = vxor.u32 %v340, 2147483648
    %v357 = vsel %vm355, %v356, %v348
    %v358 = vsel %vm351, %v354, %v357
    %v359 = vsel %vm349, nan, %v358
    %v360 = vsel %vm37, 1, 0
    %vm361 = vcmp.eq.s32.totalorder %v360, 1
    %v362 = vsel %vm361, %v205, %v359
    %v363 = vld [vmem:[#allocation2] sm:$0x3]
    %v364 = vld [vmem:[#allocation2 + $0x2] sm:$0x3]
    %v365 = vadd.f32 %v363, %v362
    %v366 = vadd.f32 %v364, %v362
    %367 = vst [vmem:[#allocation5] sm:$0x3] %v365
    %368 = vst [vmem:[#allocation5 + $0x2] sm:$0x3] %v366
    // Predicated region
    $region10: #{tpu_custom_call.1} parent=1 // pred_check
      _
    $region11: #{tpu_custom_call.1} parent=1 // pred_check_branch
      %370 = sbr.rel (0) target = $region13
    $region12: #{tpu_custom_call.1} parent=1 // pred_region
      %372 = vsyncadd [#allocation4], 0
      %s373 = sshll.u32 [#allocation5], 4
      %s374 = int_to_ptr.vmem [resolvable:$true] %s373
      %s375 = sshll.u32 %s1, 4
      %s376 = int_to_ptr.hbm [resolvable:$true] %s375
      %381 = dma.vmem_to_hbm [thread:$0]  %s374, 64, %s376, [#allocation4], 32, 32, 2
    $region13: #{tpu_custom_call.1} parent=1 // pred_fallthru
      _
    // Predicated region
    $region14: #{tpu_custom_call.1} parent=1 // pred_check
      _
    $region15: #{tpu_custom_call.1} parent=1 // pred_check_branch
      %383 = sbr.rel (0) target = $region17
    $region16: #{tpu_custom_call.1} parent=1 // pred_region
      %385 = dma.done [#allocation4], 64
    $region17: #{tpu_custom_call.1} parent=1 // pred_fallthru
      _
    %386 = vsyncpa [#allocation3], 1
    %387 = vsyncpa [#allocation4], 1

</llo_original>
